<compile_context>
chip_gen: v7x
topology: tpu7x:2x2x1
jax: 0.10.0
libtpu: 0.0.40
codegen_flags: <defaults>
</compile_context>

<pallas_src>
import jax
import jax.numpy as jnp
from jax import lax
from jax.experimental import pallas as pl
from jax.experimental.pallas import tpu as pltpu

COMPUTE_DTYPE = jnp.bfloat16      # matmul-operand dtype; accumulate/epilogue stay f32
CMAX = 224                        # max channel count inside an RDB (64 + 5*32)

_CPARAMS = pltpu.CompilerParams(
    dimension_semantics=("parallel",),
    vmem_limit_bytes=64 * 1024 * 1024,
)


# ----------------------------------------------------------------------------
# In-kernel helpers
# ----------------------------------------------------------------------------
def _leaky(x, slope=0.2):
    return jnp.where(x >= 0.0, x, slope * x)


def _shift_zfill(x, off):
    """y[:, p] = x[:, p + off], zero-filled where p + off falls outside [0, L)."""
    c, L = x.shape
    if off == 0:
        return x
    a = abs(off)
    if a >= L:
        return jnp.zeros_like(x)
    z = jnp.zeros((c, a), x.dtype)
    if off > 0:
        return jnp.concatenate([x[:, a:], z], axis=1)
    return jnp.concatenate([z, x[:, :L - a]], axis=1)


def _tap_offsets(k, Wp):
    r = (k - 1) // 2
    return [dy * Wp + dx for dy in range(-r, r + 1) for dx in range(-r, r + 1)]


def _conv_fold(x, w, Wp, k):
    """KxK 'same' conv with the taps folded into the MXU contraction dimension.

    x: (Cin, H*Wp) — image rows padded to Wp = W + 2r with zero columns at [W, Wp),
       so every tap is an unmasked zero-filled lane shift.
    w: (Cout, k*k*Cin) — contraction index t*Cin + cin with t = ky*k + kx.
    Returns (Cout, H*Wp) float32.  The pad columns of the result hold junk and must
    be re-zeroed (one select) iff the result feeds another conv in the same kernel.
    """
    stacked = jnp.concatenate(
        [_shift_zfill(x, off) for off in _tap_offsets(k, Wp)], axis=0)
    return jnp.dot(w, stacked, preferred_element_type=jnp.float32)


def _inbounds_mask(L, Wp, W):
    col = lax.broadcasted_iota(jnp.int32, (1, L), 1) % Wp
    return col < W


# ----------------------------------------------------------------------------
# BlockSpec / wrapper-layout helpers
# ----------------------------------------------------------------------------
def _full_spec(a):
    return pl.BlockSpec(a.shape, lambda n: (0,) * a.ndim)


def _act_spec(c, l):
    return pl.BlockSpec((1, c, l), lambda n: (n, 0, 0))


def _pad_ch(x, c):
    """Zero-pad the channel dim of an NCHW tensor up to c channels."""
    return jnp.pad(x, ((0, 0), (0, c - x.shape[1]), (0, 0), (0, 0)))


def _to_padded(x, r):
    """(N,C,H,W) -> (N, C, H*(W+2r)) bf16 with 2r zero pad columns per image row."""
    N, C, H, W = x.shape
    xp = jnp.pad(x, ((0, 0), (0, 0), (0, 0), (0, 2 * r)))
    return xp.reshape(N, C, H * (W + 2 * r)).astype(COMPUTE_DTYPE)


def _from_padded(y, H, W, r):
    """(N, C, H*(W+2r)) -> (N, C, H, W) (drops the pad columns)."""
    N, C, _ = y.shape
    return y.reshape(N, C, H, W + 2 * r)[:, :, :, :W]


# ----------------------------------------------------------------------------
# Fused Pallas stages
# ----------------------------------------------------------------------------
def run_k32(y0, kp):
    """conv32x[1] + RDB1 + RDB2 + RDB3 + rdball + residual (20 convs, one kernel)."""
    N, C, Hs, Ws = y0.shape                    # C == 128
    r = 1
    Wp = Ws + 2 * r
    L = Hs * Wp
    dense_counts = (4, 5, 5)
    taps = _tap_offsets(3, Wp)

    def kernel(x_ref, w1_ref, b1_ref, wd1_ref, wd2_ref, wd3_ref, p1_ref, wall_ref,
               o_ref, sbuf, hbuf):
        inb = _inbounds_mask(L, Wp, Ws)
        # Zero the scratches: channel rows not yet written are only ever read through
        # zero weight columns and must not hold non-finite uninitialised bits.
        sbuf[...] = jnp.zeros_like(sbuf)
        hbuf[...] = jnp.zeros_like(hbuf)

        # conv32x[1]: 128 -> 64, 3x3, bias.
        x0 = _conv_fold(x_ref[0], w1_ref[...], Wp, 3) + b1_ref[...]
        x0 = jnp.where(inb, x0, 0.0)                           # f32, zero pad columns

        wd_refs = (wd1_ref, wd2_ref, wd3_ref)
        cur = x0
        rdb_outs = []
        for ridx, nd in enumerate(dense_counts):               # RDB1, RDB2, RDB3
            # Base 64 channels of this RDB (raw -> hbuf, leaky+shifted -> sbuf).
            curb = cur.astype(COMPUTE_DTYPE)
            hbuf[pl.ds(0, 64), :] = curb
            cl = _leaky(curb)
            for t, off in enumerate(taps):
                sbuf[pl.ds(t * CMAX, 64), :] = _shift_zfill(cl, off)
            c = 64
            for i in range(nd):                                # make_dense layers
                d = jnp.dot(wd_refs[ridx][i], sbuf[...],
                            preferred_element_type=jnp.float32)        # (32, L)
                d = jnp.where(inb, d, 0.0)
                db = d.astype(COMPUTE_DTYPE)
                hbuf[pl.ds(c, 32), :] = db
                dl = _leaky(db)
                for t, off in enumerate(taps):
                    sbuf[pl.ds(t * CMAX + c, 32), :] = _shift_zfill(dl, off)
                c += 32
            # bias-free 1x1 back to 64 channels + RDB skip (f32).
            cur = jnp.dot(p1_ref[ridx], hbuf[...],
                          preferred_element_type=jnp.float32) + cur
            rdb_outs.append(cur.astype(COMPUTE_DTYPE))
        allc = jnp.concatenate(rdb_outs, axis=0)               # (192, L) bf16
        out = jnp.dot(wall_ref[...], allc, preferred_element_type=jnp.float32) + x0
        o_ref[0] = out.astype(COMPUTE_DTYPE)

    x_in = _to_padded(y0, r)
    inputs = [x_in, kp['w1'], kp['b1'], kp['wd1'], kp['wd2'], kp['wd3'],
              kp['p1x1'], kp['wall']]
    out = pl.pallas_call(
        kernel,
        out_shape=jax.ShapeDtypeStruct((N, 64, L), COMPUTE_DTYPE),
        grid=(N,),
        in_specs=[_act_spec(C, L)] + [_full_spec(a) for a in inputs[1:]],
        out_specs=_act_spec(64, L),
        scratch_shapes=[pltpu.VMEM((9 * CMAX, L), COMPUTE_DTYPE),   # tap-stacked buf
                        pltpu.VMEM((CMAX, L), COMPUTE_DTYPE)],      # raw-channel buf
        compiler_params=_CPARAMS,
    )(*inputs)
    return _from_padded(out, Hs, Ws, r)


def run_k8a(rdb8x_up, x8, kp):
    """conv_rdb8x (4->64, channel-padded to 16) and ResBlock(192), fused; 2 outputs."""
    N, _, Hs, Ws = rdb8x_up.shape
    r = 1
    Wp = Ws + 2 * r
    L = Hs * Wp

    def kernel(a_ref, x_ref, wr_ref, br_ref, w1_ref, w2_ref, low8x_ref, rdbc_ref):
        inb = _inbounds_mask(L, Wp, Ws)
        # conv_rdb8x: 16(=4 real)->64, 3x3, bias.
        rdbc = _conv_fold(a_ref[0], wr_ref[...], Wp, 3) + br_ref[...]
        rdbc_ref[0] = rdbc.astype(COMPUTE_DTYPE)
        # ResBlock(192): conv(lrelu(conv(lrelu(x)))) + x, bias-free.
        x = x_ref[0]                                            # (192, L) bf16
        h1 = _conv_fold(_leaky(x), w1_ref[...], Wp, 3)
        h1 = jnp.where(inb, _leaky(h1), 0.0).astype(COMPUTE_DTYPE)
        h2 = _conv_fold(h1, w2_ref[...], Wp, 3)
        low8x_ref[0] = (h2 + x).astype(COMPUTE_DTYPE)

    a_in = _to_padded(_pad_ch(rdb8x_up, 16), r)                 # (N, 16, L)
    x_in = _to_padded(x8, r)                                    # (N, 192, L)
    low8x, rdbc = pl.pallas_call(
        kernel,
        out_shape=(jax.ShapeDtypeStruct((N, 192, L), COMPUTE_DTYPE),
                   jax.ShapeDtypeStruct((N, 64, L), COMPUTE_DTYPE)),
        grid=(N,),
        in_specs=[_act_spec(16, L), _act_spec(192, L),
                  _full_spec(kp['w_rdb8x']), _full_spec(kp['b_rdb8x']),
                  _full_spec(kp['w_res1']), _full_spec(kp['w_res2'])],
        out_specs=(_act_spec(192, L), _act_spec(64, L)),
        compiler_params=_CPARAMS,
    )(a_in, x_in, kp['w_rdb8x'], kp['b_rdb8x'], kp['w_res1'], kp['w_res2'])
    return _from_padded(low8x, Hs, Ws, r), _from_padded(rdbc, Hs, Ws, r)


def run_k8b(xs, kp):
    """conv32_8_cat: block-diagonal grouped 3x3 (256->32) + 3x3 (32->192) + LReLU(0.2)."""
    N, C, Hs, Ws = xs.shape                    # C == 256
    r = 1
    Wp = Ws + 2 * r
    L = Hs * Wp

    def kernel(x_ref, w0_ref, b0_ref, w1_ref, b1_ref, o_ref):
        inb = _inbounds_mask(L, Wp, Ws)
        y = _conv_fold(x_ref[0], w0_ref[...], Wp, 3) + b0_ref[...]    # grouped conv
        yb = jnp.where(inb, y, 0.0).astype(COMPUTE_DTYPE)
        z = _conv_fold(yb, w1_ref[...], Wp, 3) + b1_ref[...]
        o_ref[0] = _leaky(z, 0.2).astype(COMPUTE_DTYPE)               # activation='after'

    x_in = _to_padded(xs, r)
    out = pl.pallas_call(
        kernel,
        out_shape=jax.ShapeDtypeStruct((N, 192, L), COMPUTE_DTYPE),
        grid=(N,),
        in_specs=[_act_spec(C, L), _full_spec(kp['w0']), _full_spec(kp['b0']),
                  _full_spec(kp['w1']), _full_spec(kp['b1'])],
        out_specs=_act_spec(192, L),
        compiler_params=_CPARAMS,
    )(x_in, kp['w0'], kp['b0'], kp['w1'], kp['b1'])
    return _from_padded(out, Hs, Ws, r)


def run_k2(low2x, cat_part, kp):
    """conv2x (5x5) + channel concat + conv_2_8_32 (5x5), fused at the 2x level."""
    N, _, Hs, Ws = low2x.shape
    r = 2
    Wp = Ws + 2 * r
    L = Hs * Wp

    def kernel(a_ref, c_ref, w2x_ref, b2x_ref, wc_ref, bc_ref, o_ref):
        inb = _inbounds_mask(L, Wp, Ws)
        a = _conv_fold(a_ref[0], w2x_ref[...], Wp, 5) + b2x_ref[...]  # (16, L), 12 real
        ab = jnp.where(inb, a, 0.0).astype(COMPUTE_DTYPE)
        x = jnp.concatenate([ab, c_ref[0]], axis=0)                   # (32, L), aligned
        o_ref[0] = _conv_fold(x, wc_ref[...], Wp, 5) + bc_ref[...]    # f32 final output

    a_in = _to_padded(_pad_ch(low2x, 16), r)
    c_in = _to_padded(_pad_ch(cat_part, 16), r)
    out = pl.pallas_call(
        kernel,
        out_shape=jax.ShapeDtypeStruct((N, 12, L), jnp.float32),
        grid=(N,),
        in_specs=[_act_spec(16, L), _act_spec(16, L),
                  _full_spec(kp['w2x']), _full_spec(kp['b2x']),
                  _full_spec(kp['wc']), _full_spec(kp['bc'])],
        out_specs=_act_spec(12, L),
        compiler_params=_CPARAMS,
    )(a_in, c_in, kp['w2x'], kp['b2x'], kp['wc'], kp['bc'])
    return _from_padded(out, Hs, Ws, r)


# ----------------------------------------------------------------------------
# Pure-JAX glue (data movement only: reshapes / transposes / one tiny grouped conv)
# ----------------------------------------------------------------------------
def downshuffle(x, r):
    b, c, h, w = x.shape
    x = x.reshape(b, c, h // r, r, w // r, r)
    x = jnp.transpose(x, (0, 1, 3, 5, 2, 4))
    return x.reshape(b, c * r * r, h // r, w // r)


def pixel_shuffle(x, r):
    b, c, h, w = x.shape
    co = c // (r * r)
    x = x.reshape(b, co, r, r, h, w)
    x = jnp.transpose(x, (0, 1, 4, 2, 5, 3))
    return x.reshape(b, co, h * r, w * r)


def channel_shuffle_g2(x):
    b, c, h, w = x.shape
    x = x.reshape(b, 2, c // 2, h, w)
    x = jnp.transpose(x, (0, 2, 1, 3, 4))
    return x.reshape(b, c, h, w)


# ----------------------------------------------------------------------------
# REDI forward
# ----------------------------------------------------------------------------
def forward(low, prep):
    N, C, H, W = low.shape
    assert C == 3 and H % 32 == 0 and W % 32 == 0
    residual = low
    low2x = downshuffle(low, 2)                                  # (N,12,H/2,W/2)
    x32 = downshuffle(low2x, 16)                                 # (N,3072,H/32,W/32)

    # conv32x[0]: 3072->128, groups=128, k=3, bias.
    # TODO(synk): 128 independent 24->1 channel contractions do not map to a useful
    # MXU matmul; kept as one tiny XLA grouped conv (bf16 operands, f32 accumulate).
    g = prep['g32']
    y0 = lax.conv_general_dilated(
        x32.astype(COMPUTE_DTYPE), g['w'], (1, 1), 'SAME', feature_group_count=128,
        dimension_numbers=('NCHW', 'OIHW', 'NCHW'),
        preferred_element_type=jnp.float32) + g['b'][None, :, None, None]

    rdb8x = run_k32(y0, prep['k32'])                             # (N,64,H/32,W/32) bf16
    rdb8x = pixel_shuffle(rdb8x, 4)                              # up4 -> (N,4,H/8,W/8)
    x8 = downshuffle(low2x, 4)                                   # (N,192,H/8,W/8)
    low8x, rdbc = run_k8a(rdb8x, x8, prep['k8a'])                # bf16, bf16

    cat_32_8 = jnp.concatenate([low8x, rdbc], axis=1)            # (N,256,H/8,W/8)
    cat_32_8 = channel_shuffle_g2(cat_32_8)                      # G=2 channel shuffle
    y8 = run_k8b(cat_32_8, prep['k8b'])                          # (N,192,H/8,W/8) bf16
    cat_part = pixel_shuffle(y8, 4)                              # up4 -> (N,12,H/2,W/2)

    low2x_out = run_k2(low2x, cat_part, prep['k2'])              # (N,12,H/2,W/2) f32
    low2x_up = pixel_shuffle(low2x_out, 2)                       # up2 -> (N,3,H,W)
    output = residual - low2x_up
    return output, output


# ----------------------------------------------------------------------------
# Deterministic synthetic parameters (PyTorch layout) + kernel-ready preparation
# ----------------------------------------------------------------------------
def _conv_w(key, cout, cin_per_group, k):
    fan_in = cin_per_group * k * k
    return jax.random.normal(key, (cout, cin_per_group, k, k), jnp.float32) * (fan_in ** -0.5)


def _bias(key, cout):
    return jax.random.normal(key, (cout,), jnp.float32) * 0.01


def init_params(key):
    keys = iter(jax.random.split(key, 64))
    nk = lambda: next(keys)
    p = {}
    p['conv32x_g'] = {'w': _conv_w(nk(), 128, 24, 3), 'b': _bias(nk(), 128)}   # groups=128
    p['conv32x_1'] = {'w': _conv_w(nk(), 64, 128, 3), 'b': _bias(nk(), 64)}

    def rdb(n_dense):
        dense, c = [], 64
        for _ in range(n_dense):
            dense.append(_conv_w(nk(), 32, c, 3))     # make_dense conv, bias=False
            c += 32
        return {'dense': dense, 'w1x1': _conv_w(nk(), 64, c, 1)}  # 1x1, bias=False

    p['rdb1'], p['rdb2'], p['rdb3'] = rdb(4), rdb(5), rdb(5)
    p['rdball'] = _conv_w(nk(), 64, 192, 1)                        # bias=False
    p['conv_rdb8x'] = {'w': _conv_w(nk(), 64, 4, 3), 'b': _bias(nk(), 64)}
    p['res8x'] = {'w1': _conv_w(nk(), 192, 192, 3), 'w2': _conv_w(nk(), 192, 192, 3)}
    p['cat0'] = {'w': _conv_w(nk(), 32, 64, 3), 'b': _bias(nk(), 32)}          # groups=4
    p['cat1'] = {'w': _conv_w(nk(), 192, 32, 3), 'b': _bias(nk(), 192)}
    p['conv2x'] = {'w': _conv_w(nk(), 12, 12, 5), 'b': _bias(nk(), 12)}
    p['conv_2_8_32'] = {'w': _conv_w(nk(), 12, 24, 5), 'b': _bias(nk(), 12)}
    return p


def _taps_cat(w, cpad=None, dtype=None):
    """(Cout,Cin,k,k) -> (Cout, k*k*Cpad): taps folded into the contraction dim,
    tap-major (t = ky*k + kx), input channels zero-padded up to cpad."""
    co, ci, k, _ = w.shape
    wt = jnp.transpose(w, (0, 2, 3, 1)).reshape(co, k * k, ci)
    if cpad is not None and cpad > ci:
        wt = jnp.pad(wt, ((0, 0), (0, 0), (0, cpad - ci)))
    return wt.reshape(co, -1).astype(dtype or COMPUTE_DTYPE)


def prepare_params(p):
    """Convert PyTorch-layout weights once into the folded kernel layout (bf16)."""
    cd = COMPUTE_DTYPE
    bcol = lambda b: b.reshape(-1, 1).astype(jnp.float32)

    prep = {'g32': {'w': p['conv32x_g']['w'].astype(cd), 'b': p['conv32x_g']['b']}}

    # --- K32: consolidated dense / 1x1 weights, zero-padded to CMAX channels -------
    rdb_names = ('rdb1', 'rdb2', 'rdb3')
    wd = {f'wd{i + 1}': jnp.stack([_taps_cat(w, cpad=CMAX) for w in p[n]['dense']], 0)
          for i, n in enumerate(rdb_names)}
    p1 = jnp.stack(
        [jnp.pad(p[n]['w1x1'][:, :, 0, 0],
                 ((0, 0), (0, CMAX - p[n]['w1x1'].shape[1]))).astype(cd)
         for n in rdb_names], axis=0)                            # (3, 64, 224)
    prep['k32'] = dict(
        w1=_taps_cat(p['conv32x_1']['w']), b1=bcol(p['conv32x_1']['b']),
        p1x1=p1, wall=p['rdball'][:, :, 0, 0].astype(cd), **wd)

    # --- K8a -----------------------------------------------------------------------
    prep['k8a'] = dict(
        w_rdb8x=_taps_cat(p['conv_rdb8x']['w'], cpad=16),        # input padded 4->16
        b_rdb8x=bcol(p['conv_rdb8x']['b']),
        w_res1=_taps_cat(p['res8x']['w1']),
        w_res2=_taps_cat(p['res8x']['w2']))

    # --- K8b: block-diagonal grouped weight (32, 9*256), K fills the MXU depth ------
    wc0 = p['cat0']['w']                                         # (32, 64, 3, 3), g=4
    wt = jnp.transpose(wc0, (0, 2, 3, 1)).reshape(32, 9, 64)
    bd = jnp.zeros((32, 9, 256), jnp.float32)
    for g in range(4):
        bd = bd.at[8 * g:8 * (g + 1), :, 64 * g:64 * (g + 1)].set(wt[8 * g:8 * (g + 1)])
    prep['k8b'] = dict(w0=bd.reshape(32, 9 * 256).astype(cd), b0=bcol(p['cat0']['b']),
                       w1=_taps_cat(p['cat1']['w']), b1=bcol(p['cat1']['b']))

    # --- K2: channels padded to 16/32 so all sublane stacking stays bf16-aligned ----
    w2x = p['conv2x']['w']                                       # (12, 12, 5, 5)
    wt = jnp.transpose(w2x, (0, 2, 3, 1)).reshape(12, 25, 12)
    wt = jnp.pad(wt, ((0, 4), (0, 0), (0, 4)))                   # out 12->16, in 12->16
    w2x_p = wt.reshape(16, 25 * 16).astype(cd)
    b2x_p = jnp.pad(p['conv2x']['b'], (0, 4)).reshape(-1, 1).astype(jnp.float32)

    wc = p['conv_2_8_32']['w']                                   # (12, 24, 5, 5)
    wt = jnp.transpose(wc, (0, 2, 3, 1)).reshape(12, 25, 24)
    wt_p = jnp.zeros((12, 25, 32), jnp.float32)
    wt_p = wt_p.at[:, :, 0:12].set(wt[:, :, 0:12])               # conv2x-out channels
    wt_p = wt_p.at[:, :, 16:28].set(wt[:, :, 12:24])             # cat_32_8 channels
    prep['k2'] = dict(w2x=w2x_p, b2x=b2x_p,
                      wc=wt_p.reshape(12, 25 * 32).astype(cd),
                      bc=bcol(p['conv_2_8_32']['b']))
    return prep


# ----------------------------------------------------------------------------
# Small built-in self-test of the folded pad-column conv against lax.conv (f32)
# ----------------------------------------------------------------------------
def _selftest_conv():
    key = jax.random.PRNGKey(42)
    for (cin, cout, H, W, k) in [(16, 7, 6, 10, 3), (8, 5, 9, 12, 5)]:
        k1, k2, key = jax.random.split(key, 3)
        x = jax.random.normal(k1, (1, cin, H, W), jnp.float32)
        w = jax.random.normal(k2, (cout, cin, k, k), jnp.float32)
        r = (k - 1) // 2
        Wp = W + 2 * r
        L = H * Wp
        wt = _taps_cat(w, dtype=jnp.float32)
        xp = jnp.pad(x, ((0, 0), (0, 0), (0, 0), (0, 2 * r))).reshape(1, cin, L)

        def kern(x_ref, w_ref, o_ref):
            o_ref[0] = _conv_fold(x_ref[0], w_ref[...], Wp, k)

        out = pl.pallas_call(
            kern,
            out_shape=jax.ShapeDtypeStruct((1, cout, L), jnp.float32),
            grid=(1,),
            in_specs=[_act_spec(cin, L), _full_spec(wt)],
            out_specs=_act_spec(cout, L),
        )(xp, wt)
        out = out.reshape(1, cout, H, Wp)[:, :, :, :W]
        ref = lax.conv_general_dilated(x, w, (1, 1), 'SAME',
                                       dimension_numbers=('NCHW', 'OIHW', 'NCHW'))
        assert bool(jnp.allclose(out, ref, rtol=1e-3, atol=1e-3)), \
            "in-kernel folded conv self-test failed"


# ----------------------------------------------------------------------------
if __name__ == "__main__":
    _selftest_conv()

    key = jax.random.PRNGKey(0)
    kx, kparams = jax.random.split(key)
    # Input spatial size must be divisible by 32 (downshuffle by 2 then 16).
    low = jax.random.normal(kx, (2, 3, 64, 64), jnp.float32)

    params = init_params(kparams)
    prep = prepare_params(params)          # one-time weight folding / bf16 conversion

    fwd = jax.jit(forward)
    out1, out2 = fwd(low, prep)
    jax.block_until_ready(out1)
    jax.block_until_ready(out2)

    assert out1.shape == (2, 3, 64, 64) and out2.shape == (2, 3, 64, 64)
    assert bool(jnp.all(jnp.isfinite(out1)))
    print("KERNEL_OK")
</pallas_src>

<mosaic_0001>
module attributes {stable_mosaic.version = 11 : i64} {
  func.func @kern(%arg0: i32, %arg1: memref<1x16x72xf32, #tpu.memory_space<vmem>>, %arg2: memref<7x144xf32, #tpu.memory_space<vmem>>, %arg3: memref<1x7x72xf32, #tpu.memory_space<vmem>>) attributes {dimension_semantics = [#tpu.dimension_semantics<arbitrary>], iteration_bounds = array<i64: 1>, scalar_prefetch = 0 : i64, scratch_operands = 0 : i64, tpu.core_type = #tpu.core_type<tc>, window_params = [{transform_indices = @transform_0, window_bounds = array<i64: 1, 16, 72>}, {pipeline_mode = #tpu.pipeline_mode<synchronous>, transform_indices = @transform_1, window_bounds = array<i64: 7, 144>}, {transform_indices = @transform_2, window_bounds = array<i64: 1, 7, 72>}]} {
    %c0 = arith.constant 0 : index
    %c0_0 = arith.constant 0 : index
    %c0_1 = arith.constant 0 : index
    %0 = vector.load %arg1[%c0, %c0_0, %c0_1] : memref<1x16x72xf32, #tpu.memory_space<vmem>>, vector<1x16x72xf32>
    %1 = vector.shape_cast %0 : vector<1x16x72xf32> to vector<16x72xf32>
    %c0_2 = arith.constant 0 : index
    %c0_3 = arith.constant 0 : index
    %2 = vector.load %arg2[%c0_2, %c0_3] : memref<7x144xf32, #tpu.memory_space<vmem>>, vector<7x144xf32>
    %cst = arith.constant 0.000000e+00 : f32
    %3 = vector.broadcast %cst : f32 to vector<16x13xf32>
    %4 = vector.extract_strided_slice %1 {offsets = [0, 0], sizes = [16, 59], strides = [1, 1]} : vector<16x72xf32> to vector<16x59xf32>
    %5 = tpu.concatenate %3, %4 in 1 : vector<16x13xf32>, vector<16x59xf32> -> vector<16x72xf32>
    %cst_4 = arith.constant 0.000000e+00 : f32
    %6 = vector.broadcast %cst_4 : f32 to vector<16x12xf32>
    %7 = vector.extract_strided_slice %1 {offsets = [0, 0], sizes = [16, 60], strides = [1, 1]} : vector<16x72xf32> to vector<16x60xf32>
    %8 = tpu.concatenate %6, %7 in 1 : vector<16x12xf32>, vector<16x60xf32> -> vector<16x72xf32>
    %cst_5 = arith.constant 0.000000e+00 : f32
    %9 = vector.broadcast %cst_5 : f32 to vector<16x11xf32>
    %10 = vector.extract_strided_slice %1 {offsets = [0, 0], sizes = [16, 61], strides = [1, 1]} : vector<16x72xf32> to vector<16x61xf32>
    %11 = tpu.concatenate %9, %10 in 1 : vector<16x11xf32>, vector<16x61xf32> -> vector<16x72xf32>
    %cst_6 = arith.constant 0.000000e+00 : f32
    %12 = vector.broadcast %cst_6 : f32 to vector<16x1xf32>
    %13 = vector.extract_strided_slice %1 {offsets = [0, 0], sizes = [16, 71], strides = [1, 1]} : vector<16x72xf32> to vector<16x71xf32>
    %14 = tpu.concatenate %12, %13 in 1 : vector<16x1xf32>, vector<16x71xf32> -> vector<16x72xf32>
    %cst_7 = arith.constant 0.000000e+00 : f32
    %15 = vector.broadcast %cst_7 : f32 to vector<16x1xf32>
    %16 = vector.extract_strided_slice %1 {offsets = [0, 1], sizes = [16, 71], strides = [1, 1]} : vector<16x72xf32> to vector<16x71xf32>
    %17 = tpu.concatenate %16, %15 in 1 : vector<16x71xf32>, vector<16x1xf32> -> vector<16x72xf32>
    %cst_8 = arith.constant 0.000000e+00 : f32
    %18 = vector.broadcast %cst_8 : f32 to vector<16x11xf32>
    %19 = vector.extract_strided_slice %1 {offsets = [0, 11], sizes = [16, 61], strides = [1, 1]} : vector<16x72xf32> to vector<16x61xf32>
    %20 = tpu.concatenate %19, %18 in 1 : vector<16x61xf32>, vector<16x11xf32> -> vector<16x72xf32>
    %cst_9 = arith.constant 0.000000e+00 : f32
    %21 = vector.broadcast %cst_9 : f32 to vector<16x12xf32>
    %22 = vector.extract_strided_slice %1 {offsets = [0, 12], sizes = [16, 60], strides = [1, 1]} : vector<16x72xf32> to vector<16x60xf32>
    %23 = tpu.concatenate %22, %21 in 1 : vector<16x60xf32>, vector<16x12xf32> -> vector<16x72xf32>
    %cst_10 = arith.constant 0.000000e+00 : f32
    %24 = vector.broadcast %cst_10 : f32 to vector<16x13xf32>
    %25 = vector.extract_strided_slice %1 {offsets = [0, 13], sizes = [16, 59], strides = [1, 1]} : vector<16x72xf32> to vector<16x59xf32>
    %26 = tpu.concatenate %25, %24 in 1 : vector<16x59xf32>, vector<16x13xf32> -> vector<16x72xf32>
    %27 = tpu.concatenate %5, %8, %11, %14, %1, %17, %20, %23, %26 in 0 : vector<16x72xf32>, vector<16x72xf32>, vector<16x72xf32>, vector<16x72xf32>, vector<16x72xf32>, vector<16x72xf32>, vector<16x72xf32>, vector<16x72xf32>, vector<16x72xf32> -> vector<144x72xf32>
    %cst_11 = arith.constant dense<0.000000e+00> : vector<7x72xf32>
    %28 = tpu.matmul %2, %27, %cst_11 {dimension_numbers = #tpu.dot_dimension_numbers<[1], [0], [0], [1], [0, 0, 1, 1], [], []>} : vector<7x144xf32>, vector<144x72xf32>, vector<7x72xf32> -> vector<7x72xf32>
    %c0_12 = arith.constant 0 : index
    %c0_13 = arith.constant 0 : index
    %c0_14 = arith.constant 0 : index
    %29 = vector.load %arg3[%c0_12, %c0_13, %c0_14] : memref<1x7x72xf32, #tpu.memory_space<vmem>>, vector<1x7x72xf32>
    %30 = vector.shape_cast %29 : vector<1x7x72xf32> to vector<7x72xf32>
    %31 = vector.shape_cast %28 : vector<7x72xf32> to vector<1x7x72xf32>
    tpu.vector_store %arg3[%c0_12, %c0_13, %c0_14], %31 {strides = array<i32>} : memref<1x7x72xf32, #tpu.memory_space<vmem>>, vector<1x7x72xf32>,
    return
  }
  func.func @transform_0(%arg0: i32) -> (i32, i32, i32) {
    %c0_i32 = arith.constant 0 : i32
    %c0_i32_0 = arith.constant 0 : i32
    %c0_i32_1 = arith.constant 0 : i32
    return %arg0, %c0_i32, %c0_i32_0 : i32, i32, i32
  }
  func.func @transform_1(%arg0: i32) -> (i32, i32) {
    %c0_i32 = arith.constant 0 : i32
    %c0_i32_0 = arith.constant 0 : i32
    %c0_i32_1 = arith.constant 0 : i32
    return %c0_i32, %c0_i32_0 : i32, i32
  }
  func.func @transform_2(%arg0: i32) -> (i32, i32, i32) {
    %c0_i32 = arith.constant 0 : i32
    %c0_i32_0 = arith.constant 0 : i32
    %c0_i32_1 = arith.constant 0 : i32
    return %arg0, %c0_i32, %c0_i32_0 : i32, i32, i32
  }
}

</mosaic_0001>

<llo_original>
// kernel: tpu_custom_call.1
$region0: #{tpu_custom_call.1}
  #allocation0 [shape = 'u32[]', space=smem, size = 0x4, offset = 0x4, fixed_abs, tag = 'smem constant byte address 0x4 - core index']
  #allocation1 [shape = 'u32[144,128]{1,0:T(1,128)}', space=vmem, size = 0x12000, scoped, tag = 'internal scratch']
  %s0 = inlined_call_operand.hbm [shape: f32[1,16,72], index: 0, kind: input, shape index: {}]
  %s1 = inlined_call_operand.hbm [shape: f32[7,144], index: 1, kind: input, shape index: {}]
  %s2 = inlined_call_operand.vmem [shape: f32[1,7,72], index: 2, kind: output, shape index: {}]
  %s3 = sld [smem:[#allocation0]]
  $region26: #{tpu_custom_call.1} parent=0
    _
  %s5 = ssub.s32 1, %s3
  %s6 = scalar_select 0, %s5, %s3
  $region1: #{tpu_custom_call.1} parent=0
    #allocation2 [shape = 'u8[8192]{0}', space=vmem, size = 0x2000, scoped, tag = 'input window, operand 0, single buffered']
    #allocation3 [shape = 's32[1]{0}', space=sflag, size = 0x4, scoped, tag = 'scoped memory for tpu_custom_call.1']
    #allocation4 [shape = 'u8[8192]{0}', space=vmem, size = 0x2000, scoped, tag = 'input window, operand 1, single buffered']
    #allocation5 [shape = 's32[1]{0}', space=sflag, size = 0x4, scoped, tag = 'scoped memory for tpu_custom_call.1']
    %7 = vsyncpa [#allocation3], 0
    %8 = vsyncpa [#allocation5], 0
    // Predicated region
    $region2: #{tpu_custom_call.1} parent=1 // pred_check
      _
    $region3: #{tpu_custom_call.1} parent=1 // pred_check_branch
      %10 = sbr.rel (0) target = $region5
    $region4: #{tpu_custom_call.1} parent=1 // pred_region
      %s12 = ssub.s32 256, 256
      %13 = vsyncadd [#allocation3], %s12
      %s14 = sshll.u32 [#allocation2], 4
      %s15 = int_to_ptr.vmem [resolvable:$true] %s14
      %20 = dma.hbm_to_vmem [thread:$0]  %s0, 256, %s15, [#allocation3], 128, 128, 8
    $region5: #{tpu_custom_call.1} parent=1 // pred_fallthru
      _
    // Predicated region
    $region6: #{tpu_custom_call.1} parent=1 // pred_check
      _
    $region7: #{tpu_custom_call.1} parent=1 // pred_check_branch
      %22 = sbr.rel (0) target = $region9
    $region8: #{tpu_custom_call.1} parent=1 // pred_region
      %s24 = ssub.s32 256, 256
      %25 = vsyncadd [#allocation5], %s24
      %s27 = sshll.u32 [#allocation4], 4
      %s28 = int_to_ptr.vmem [resolvable:$true] %s27
      %30 = dma.hbm_to_vmem [thread:$0]  %s1, 256, %s28, [#allocation5]
    $region9: #{tpu_custom_call.1} parent=1 // pred_fallthru
      _
    // Predicated region
    $region10: #{tpu_custom_call.1} parent=1 // pred_check
      _
    $region11: #{tpu_custom_call.1} parent=1 // pred_check_branch
      %32 = sbr.rel (0) target = $region13
    $region12: #{tpu_custom_call.1} parent=1 // pred_region
      %33 = dma.done [#allocation3], 256
    $region13: #{tpu_custom_call.1} parent=1 // pred_fallthru
      _
    // Predicated region
    $region14: #{tpu_custom_call.1} parent=1 // pred_check
      _
    $region15: #{tpu_custom_call.1} parent=1 // pred_check_branch
      %35 = sbr.rel (0) target = $region17
    $region16: #{tpu_custom_call.1} parent=1 // pred_region
      %36 = dma.done [#allocation5], 256
    $region17: #{tpu_custom_call.1} parent=1 // pred_fallthru
      _
    %v37 = vld [vmem:[#allocation2] sm:$0xff]
    %v38 = vld [vmem:[#allocation2 + $0x8] sm:$0xff]
    %v39 = vld [vmem:[#allocation4] sm:$0x7f]
    %v40 = vld [vmem:[#allocation4 + $0x8] sm:$0x7f]
    %43 = vrot.lane.b32.xlu0 %v37, 13
    %v44 = vpop.permute.xlu0 %43
    %45 = vrot.lane.b32.xlu0 %v38, 13
    %v46 = vpop.permute.xlu0 %45
    %vm49 = vcmask 105472
    %v50 = vsel %vm49, 0.0, %v44
    %v51 = vsel %vm49, 0.0, %v46
    %52 = vrot.lane.b32.xlu0 %v37, 12
    %v53 = vpop.permute.xlu0 %52
    %54 = vrot.lane.b32.xlu0 %v38, 12
    %v55 = vpop.permute.xlu0 %54
    %vm58 = vcmask 97280
    %v59 = vsel %vm58, 0.0, %v53
    %v60 = vsel %vm58, 0.0, %v55
    %61 = vrot.lane.b32.xlu0 %v37, 11
    %v62 = vpop.permute.xlu0 %61
    %63 = vrot.lane.b32.xlu0 %v38, 11
    %v64 = vpop.permute.xlu0 %63
    %vm67 = vcmask 89088
    %v68 = vsel %vm67, 0.0, %v62
    %v69 = vsel %vm67, 0.0, %v64
    %70 = vrot.lane.b32.xlu0 %v37, 1
    %v71 = vpop.permute.xlu0 %70
    %72 = vrot.lane.b32.xlu0 %v38, 1
    %v73 = vpop.permute.xlu0 %72
    %vm76 = vcmask 7168
    %v77 = vsel %vm76, 0.0, %v71
    %v78 = vsel %vm76, 0.0, %v73
    %79 = vrot.lane.b32.xlu0 %v37, 127
    %v80 = vpop.permute.xlu0 %79
    %81 = vrot.lane.b32.xlu0 %v38, 127
    %v82 = vpop.permute.xlu0 %81
    %vm85 = vcmask 580608
    %v86 = vsel %vm85, %v80, 0.0
    %v87 = vsel %vm85, %v82, 0.0
    %88 = vrot.lane.b32.xlu0 %v37, 117
    %v89 = vpop.permute.xlu0 %88
    %90 = vrot.lane.b32.xlu0 %v38, 117
    %v91 = vpop.permute.xlu0 %90
    %vm94 = vcmask 498688
    %v95 = vsel %vm94, %v89, 0.0
    %v96 = vsel %vm94, %v91, 0.0
    %97 = vrot.lane.b32.xlu0 %v37, 116
    %v98 = vpop.permute.xlu0 %97
    %99 = vrot.lane.b32.xlu0 %v38, 116
    %v100 = vpop.permute.xlu0 %99
    %vm103 = vcmask 490496
    %v104 = vsel %vm103, %v98, 0.0
    %v105 = vsel %vm103, %v100, 0.0
    %106 = vrot.lane.b32.xlu0 %v37, 115
    %v107 = vpop.permute.xlu0 %106
    %108 = vrot.lane.b32.xlu0 %v38, 115
    %v109 = vpop.permute.xlu0 %108
    %vm112 = vcmask 482304
    %v113 = vsel %vm112, %v107, 0.0
    %v114 = vsel %vm112, %v109, 0.0
    %vm115 = vcmask 130048
    %v117 = vsel %vm115, %v40, 0
    %119 = vmatprep.subr.mxu0 0.0
    %120 = vmatpush1.msra.mxu0 %v50
    %121 = vmatprep.subr.mxu0 0.0
    %122 = vmatpush1.msra.mxu0 %v51
    %123 = vmatprep.subr.mxu0 0.0
    %124 = vmatpush1.msra.mxu0 %v59
    %125 = vmatprep.subr.mxu0 0.0
    %126 = vmatpush1.msra.mxu0 %v60
    %127 = vmatprep.subr.mxu0 0.0
    %128 = vmatpush1.msra.mxu0 %v68
    %129 = vmatprep.subr.mxu0 0.0
    %130 = vmatpush1.msra.mxu0 %v69
    %131 = vmatprep.subr.mxu0 0.0
    %132 = vmatpush1.msra.mxu0 %v77
    %133 = vmatprep.subr.mxu0 0.0
    %134 = vmatpush1.msra.mxu0 %v78
    %135 = vmatprep.subr.mxu0 0.0
    %136 = vmatpush1.msra.mxu0 %v37
    %137 = vmatprep.subr.mxu0 0.0
    %138 = vmatpush1.msra.mxu0 %v38
    %139 = vmatprep.subr.mxu0 0.0
    %140 = vmatpush1.msra.mxu0 %v86
    %141 = vmatprep.subr.mxu0 0.0
    %142 = vmatpush1.msra.mxu0 %v87
    %143 = vmatprep.subr.mxu0 0.0
    %144 = vmatpush1.msra.mxu0 %v95
    %145 = vmatprep.subr.mxu0 0.0
    %146 = vmatpush1.msra.mxu0 %v96
    %147 = vmatprep.subr.mxu0 0.0
    %148 = vmatpush1.msra.mxu0 %v104
    %149 = vmatprep.subr.mxu0 0.0
    %150 = vmatpush1.msra.mxu0 %v105
    %151 = vmatprep.subr.mxu0 0.0
    %152 = vmatpush1.msra.mxu0 %v113
    %153 = vmatprep.subr.mxu0 0.0
    %154 = vmatpush1.msra.mxu0 %v114
    %155 = vmatprep.subr.mxu0 0.0
    %156 = vmatpush1.msra.mxu0 0.0
    %157 = vmatprep.subr.mxu0 0.0
    %158 = vmatpush1.msra.mxu0 0.0
    %159 = vmatprep.subr.mxu0 0.0
    %160 = vmatpush1.msra.mxu0 0.0
    %161 = vmatprep.subr.mxu0 0.0
    %162 = vmatpush1.msra.mxu0 0.0
    %163 = vmatprep.subr.mxu0 0.0
    %164 = vmatpush1.msra.mxu0 0.0
    %165 = vmatprep.subr.mxu0 0.0
    %166 = vmatpush1.msra.mxu0 0.0
    %167 = vmatprep.subr.mxu0 0.0
    %168 = vmatpush1.msra.mxu0 0.0
    %169 = vmatprep.subr.mxu0 0.0
    %170 = vmatpush1.msra.mxu0 0.0
    %171 = vmatprep.subr.mxu0 0.0
    %172 = vmatpush1.msra.mxu0 0.0
    %173 = vmatprep.subr.mxu0 0.0
    %174 = vmatpush1.msra.mxu0 0.0
    %175 = vmatprep.subr.mxu0 0.0
    %176 = vmatpush1.msra.mxu0 0.0
    %177 = vmatprep.subr.mxu0 0.0
    %178 = vmatpush1.msra.mxu0 0.0
    %179 = vmatprep.subr.mxu0 0.0
    %180 = vmatpush1.msra.mxu0 0.0
    %181 = vmatprep.subr.mxu0 0.0
    %182 = vmatpush1.msra.mxu0 0.0
    %183 = vmatprep.mubr.f32.mxu0 %v117
    %184 = vmatmul.mubr.f32.gmra.mrb[0].mxu0 %v39
    %v185 = vpop.f32.mrb[0].mxu0
    %v186 = vadd.f32 0.0, %v185
    %v187 = vpop.f32.mrb[0].mxu0
    %188 = vdwg.mxu0
    %vm189 = vcmask 587776
    %190 = vst.msk [vmem:[%s2] sm:$0x7f] %vm189, %v186
    // Predicated region
    $region18: #{tpu_custom_call.1} parent=1 // pred_check
      _
    $region19: #{tpu_custom_call.1} parent=1 // pred_check_branch
      %192 = sbr.rel (0) target = $region21
    $region20: #{tpu_custom_call.1} parent=1 // pred_region
      _
    $region21: #{tpu_custom_call.1} parent=1 // pred_fallthru
      _
    // Predicated region
    $region22: #{tpu_custom_call.1} parent=1 // pred_check
      _
    $region23: #{tpu_custom_call.1} parent=1 // pred_check_branch
      %194 = sbr.rel (0) target = $region25
    $region24: #{tpu_custom_call.1} parent=1 // pred_region
      _
    $region25: #{tpu_custom_call.1} parent=1 // pred_fallthru
      _
    %195 = vsyncpa [#allocation3], 1
    %196 = vsyncpa [#allocation5], 1

</llo_original>
